<compile_context>
chip_gen: v6e
topology: v6e:2x2x1
jax: 0.10.0
libtpu: 0.0.40
codegen_flags: <defaults>
</compile_context>

<pallas_src>
import functools

import jax
import jax.numpy as jnp
from jax.experimental import pallas as pl
from jax.experimental.pallas import tpu as pltpu


# ---------------------------------------------------------------------------
# helpers
# ---------------------------------------------------------------------------
_TWO_PASS_BLOCK_TARGET = 2 << 20   # ~2 MiB x block per grid step (>=85% HBM roofline)
_MAX_FUSED_BATCH = 16              # cap on samples per fused block (static unroll bound)


def _largest_divisor_leq(n, limit):
    best = 1
    for d in range(1, n + 1):
        if n % d == 0 and d <= limit:
            best = d
    return best


def _vmem_budgets():
    """Per-generation (fused-footprint cap, raised vmem_limit_bytes)."""
    try:
        cap = int(pltpu.get_tpu_info().vmem_capacity_bytes)
    except Exception:
        cap = 64 << 20            # unknown chip -> most conservative (v7x-class)
    if cap <= (64 << 20):         # v7x: 64 MiB VMEM per TensorCore
        return 36 << 20, 56 << 20
    return 64 << 20, 100 << 20    # v5e / v6e: 128 MiB physical VMEM


def _choose_hw_tile(hw, c, itemsize, target_bytes=_TWO_PASS_BLOCK_TARGET):
    """HW tile for the two-pass path: the full extent when small enough
    (full-dim blocks waive the 128-divisibility rule), else a 128-aligned tile
    of roughly `target_bytes`."""
    if c * hw * itemsize <= 2 * target_bytes or hw <= 128:
        return hw
    t = (target_bytes // (c * itemsize)) // 128 * 128
    return max(128, t)


# ---------------------------------------------------------------------------
# kernels
# ---------------------------------------------------------------------------
def _se_fused_kernel(x_ref, w1_ref, w2_ref, o_ref, *, inv_hw, n_blk):
    # x_ref / o_ref: (n_blk, C, HW) in x.dtype; w1_ref: (Cr, C); w2_ref: (C, Cr)
    # Pool + excite + rescale fused: 1 read + 1 write of x.
    w1 = w1_ref[...]
    w2 = w2_ref[...]
    # Per-sample excite chain, statically unrolled (n_blk is small).  The tiny
    # matmuls are negligible next to the block DMA; batching the *block* over
    # n_blk samples is what amortizes per-grid-step overhead.
    for i in range(n_blk):
        xi = x_ref[i]                                                       # (C, HW)
        pooled = jnp.sum(xi, axis=-1, keepdims=True,
                         dtype=jnp.float32) * inv_hw                        # (C, 1) f32
        h = jnp.maximum(
            jnp.dot(w1, pooled, preferred_element_type=jnp.float32), 0.0)   # (Cr, 1)
        z = jnp.dot(w2, h, preferred_element_type=jnp.float32)              # (C, 1)
        s = 1.0 / (1.0 + jnp.exp(-z))                                       # (C, 1)
        o_ref[i] = (xi * s.astype(xi.dtype)).astype(o_ref.dtype)


def _squeeze_excite_kernel(x_ref, w1_ref, w2_ref, s_ref, acc_ref,
                           *, hw_true, hw_tile, mask_last):
    # x_ref: (1, C, hw_tile); w1_ref: (Cr, C); w2_ref: (C, Cr)
    # s_ref: (1, C, 1) in x.dtype; acc_ref: (C, 1) f32 scratch.
    # NOTE: correctness requires HW to be the innermost grid axis so acc_ref is
    # re-zeroed at t == 0 before each new sample (do not reorder the grid).
    t = pl.program_id(1)

    @pl.when(t == 0)
    def _():
        acc_ref[...] = jnp.zeros_like(acc_ref)

    x = x_ref[0]                                                            # (C, hw_tile)
    if mask_last:
        # grid = cdiv(HW, hw_tile): zero the out-of-range lanes of the last
        # (partial) tile before they enter the pooled sum.
        valid = hw_true - t * hw_tile
        lane = jax.lax.broadcasted_iota(jnp.int32, x.shape, 1)
        x = jnp.where(lane < valid, x, jnp.zeros_like(x))
    acc_ref[...] += jnp.sum(x, axis=-1, keepdims=True, dtype=jnp.float32)   # (C, 1)

    @pl.when(t == pl.num_programs(1) - 1)
    def _():
        pooled = acc_ref[...] * (1.0 / hw_true)                             # (C, 1)
        h = jnp.maximum(
            jnp.dot(w1_ref[...], pooled,
                    preferred_element_type=jnp.float32), 0.0)               # (Cr, 1)
        z = jnp.dot(w2_ref[...], h, preferred_element_type=jnp.float32)     # (C, 1)
        s_ref[0] = (1.0 / (1.0 + jnp.exp(-z))).astype(s_ref.dtype)


def _scale_kernel(x_ref, s_ref, o_ref):
    # x_ref / o_ref: (1, C, hw_tile) in x.dtype; s_ref: (1, C, 1) already in
    # x.dtype, so there is no per-step convert.  OOB stores on the last partial
    # HW tile are dropped automatically.
    o_ref[...] = x_ref[...] * s_ref[...]


# ---------------------------------------------------------------------------
# wrappers
# ---------------------------------------------------------------------------
def _se_fused(x3, w1, w2, n_blk, vmem_limit):
    N, C, HW = x3.shape
    Cr = w1.shape[0]
    kernel = functools.partial(_se_fused_kernel, inv_hw=1.0 / HW, n_blk=n_blk)
    return pl.pallas_call(
        kernel,
        out_shape=jax.ShapeDtypeStruct((N, C, HW), x3.dtype),
        grid_spec=pltpu.PrefetchScalarGridSpec(
            num_scalar_prefetch=0,
            grid=(N // n_blk,),
            in_specs=[
                pl.BlockSpec((n_blk, C, HW), lambda b: (b, 0, 0)),
                pl.BlockSpec((Cr, C), lambda b: (0, 0)),
                pl.BlockSpec((C, Cr), lambda b: (0, 0)),
            ],
            out_specs=pl.BlockSpec((n_blk, C, HW), lambda b: (b, 0, 0)),
        ),
        compiler_params=pltpu.CompilerParams(
            dimension_semantics=("parallel",),
            vmem_limit_bytes=vmem_limit),
    )(x3, w1, w2)


def _se_two_pass(x3, w1, w2, hw_tile=None):
    N, C, HW = x3.shape
    Cr = w1.shape[0]
    itemsize = jnp.dtype(x3.dtype).itemsize
    if hw_tile is None:
        hw_tile = _choose_hw_tile(HW, C, itemsize)
    n_hw = pl.cdiv(HW, hw_tile)
    mask_last = (HW % hw_tile) != 0

    # ---- pass A: pooled mean + excite -> (N, C, 1) scale in x.dtype ---------
    sq_kernel = functools.partial(_squeeze_excite_kernel, hw_true=HW,
                                  hw_tile=hw_tile, mask_last=mask_last)
    s = pl.pallas_call(
        sq_kernel,
        out_shape=jax.ShapeDtypeStruct((N, C, 1), x3.dtype),
        grid_spec=pltpu.PrefetchScalarGridSpec(
            num_scalar_prefetch=0,
            grid=(N, n_hw),                           # HW reduction axis innermost
            in_specs=[
                pl.BlockSpec((1, C, hw_tile), lambda n, t: (n, 0, t)),
                pl.BlockSpec((Cr, C), lambda n, t: (0, 0)),
                pl.BlockSpec((C, Cr), lambda n, t: (0, 0)),
            ],
            out_specs=pl.BlockSpec((1, C, 1), lambda n, t: (n, 0, 0)),
            scratch_shapes=[pltpu.VMEM((C, 1), jnp.float32)],
        ),
        compiler_params=pltpu.CompilerParams(
            dimension_semantics=("parallel", "arbitrary")),
    )(x3, w1, w2)

    # ---- pass B: mem-bound rescale with lane-dense tiles; no pad, no slice --
    return pl.pallas_call(
        _scale_kernel,
        out_shape=jax.ShapeDtypeStruct((N, C, HW), x3.dtype),
        grid_spec=pltpu.PrefetchScalarGridSpec(
            num_scalar_prefetch=0,
            grid=(N, n_hw),
            in_specs=[
                pl.BlockSpec((1, C, hw_tile), lambda n, t: (n, 0, t)),
                pl.BlockSpec((1, C, 1), lambda n, t: (n, 0, 0)),
            ],
            out_specs=pl.BlockSpec((1, C, hw_tile), lambda n, t: (n, 0, t)),
        ),
        compiler_params=pltpu.CompilerParams(
            dimension_semantics=("parallel", "parallel")),
    )(x3, s)


def se_module(x, w1, w2, *, single_pass=None, hw_tile=None):
    """SEModule forward.  x: (N, C, H, W); w1: (C//r, C); w2: (C, C//r)."""
    N, C, H, W = x.shape
    HW = H * W
    itemsize = jnp.dtype(x.dtype).itemsize
    x3 = x.reshape(N, C, HW)               # no padding: blocks use exact HW extent

    fused_cap, raised_limit = _vmem_budgets()
    per_sample = C * HW * itemsize         # bytes of one sample's feature map

    if single_pass is None:
        # fused = 1R+1W of x (vs 2R+1W two-pass); double-buffered in+out
        # footprint is 4 * n_blk * per_sample, capped per generation.
        single_pass = 4 * per_sample <= fused_cap

    if single_pass:
        max_nb = min(max(1, fused_cap // (4 * per_sample)), _MAX_FUSED_BATCH)
        if N >= 2:
            max_nb = min(max_nb, N // 2)   # grid extent >= 2: feed both v7x TCs
        # TODO(synk): for N == 1 on dual-TensorCore chips the fused grid has a
        # single step; splitting channels would be needed to use both TCs.
        n_blk = _largest_divisor_leq(N, max_nb)
        fused_need = 4 * n_blk * per_sample
        limit = raised_limit if fused_need > (24 << 20) else None
        out = _se_fused(x3, w1, w2, n_blk, limit)
    else:
        out = _se_two_pass(x3, w1, w2, hw_tile=hw_tile)

    return out.reshape(N, C, H, W)


# ---------------------------------------------------------------------------
# reference + test
# ---------------------------------------------------------------------------
def se_reference(x, w1, w2):
    pooled = jnp.mean(x, axis=(2, 3))                     # (N, C)
    h = jnp.maximum(pooled @ w1.T, 0.0)                   # (N, Cr)
    s = jax.nn.sigmoid(h @ w2.T)                          # (N, C)
    return x * s[:, :, None, None]


if __name__ == "__main__":
    key = jax.random.PRNGKey(0)
    kx, k1, k2, kx2 = jax.random.split(key, 4)

    # ---- case 1: (2, 4, 16, 16), reduction=2 (128-aligned spatial size) ----
    N, C, H, W = 2, 4, 16, 16
    Cr = C // 2
    x = jax.random.normal(kx, (N, C, H, W), dtype=jnp.float32)
    # fc1: xavier_uniform_ on a (Cr, C, 1, 1) conv weight -> bound sqrt(6/(C+Cr))
    b1 = (6.0 / (C + Cr)) ** 0.5
    w1 = jax.random.uniform(k1, (Cr, C), jnp.float32, -b1, b1)
    # fc2: Conv2d default kaiming_uniform_(a=sqrt(5)) -> bound 1/sqrt(fan_in)
    b2 = 1.0 / (Cr ** 0.5)
    w2 = jax.random.uniform(k2, (C, Cr), jnp.float32, -b2, b2)

    ref = se_reference(x, w1, w2)
    for kwargs in (dict(), dict(single_pass=True), dict(single_pass=False)):
        out = jax.block_until_ready(se_module(x, w1, w2, **kwargs))
        assert out.shape == x.shape and out.dtype == x.dtype
        assert jnp.allclose(out, ref, atol=1e-5, rtol=1e-5), f"mismatch ({kwargs})"

    # ---- case 2: (2, 8, 15, 15) — non-128-aligned HW=225 exercises the
    # full-extent fused block and the masked last tile of the two-pass path ----
    N2, C2 = 2, 8
    Cr2 = C2 // 2
    x2 = jax.random.normal(kx2, (N2, C2, 15, 15), dtype=jnp.float32)
    w1b = jax.random.uniform(k1, (Cr2, C2), jnp.float32, -0.4, 0.4)
    w2b = jax.random.uniform(k2, (C2, Cr2), jnp.float32, -0.5, 0.5)
    ref2 = se_reference(x2, w1b, w2b)

    out2a = jax.block_until_ready(se_module(x2, w1b, w2b, single_pass=True))
    out2b = jax.block_until_ready(
        se_module(x2, w1b, w2b, single_pass=False, hw_tile=128))
    assert jnp.allclose(out2a, ref2, atol=1e-5, rtol=1e-5), "fused mismatch (unaligned)"
    assert jnp.allclose(out2b, ref2, atol=1e-5, rtol=1e-5), "two-pass mismatch (masked)"

    print("KERNEL_OK")
</pallas_src>

<mosaic_0001>
module attributes {stable_mosaic.version = 11 : i64} {
  func.func @_se_fused_kernel(%arg0: i32, %arg1: memref<1x4x256xf32, #tpu.memory_space<vmem>>, %arg2: memref<2x4xf32, #tpu.memory_space<vmem>>, %arg3: memref<4x2xf32, #tpu.memory_space<vmem>>, %arg4: memref<1x4x256xf32, #tpu.memory_space<vmem>>) attributes {dimension_semantics = [#tpu.dimension_semantics<parallel>], iteration_bounds = array<i64: 2>, scalar_prefetch = 0 : i64, scratch_operands = 0 : i64, tpu.core_type = #tpu.core_type<tc>, window_params = [{transform_indices = @transform_0, window_bounds = array<i64: 1, 4, 256>}, {pipeline_mode = #tpu.pipeline_mode<synchronous>, transform_indices = @transform_1, window_bounds = array<i64: 2, 4>}, {pipeline_mode = #tpu.pipeline_mode<synchronous>, transform_indices = @transform_2, window_bounds = array<i64: 4, 2>}, {transform_indices = @transform_3, window_bounds = array<i64: 1, 4, 256>}]} {
    %c0 = arith.constant 0 : index
    %c0_0 = arith.constant 0 : index
    %0 = vector.load %arg2[%c0, %c0_0] : memref<2x4xf32, #tpu.memory_space<vmem>>, vector<2x4xf32>
    %c0_1 = arith.constant 0 : index
    %c0_2 = arith.constant 0 : index
    %1 = vector.load %arg3[%c0_1, %c0_2] : memref<4x2xf32, #tpu.memory_space<vmem>>, vector<4x2xf32>
    %c0_3 = arith.constant 0 : index
    %c0_4 = arith.constant 0 : index
    %c0_5 = arith.constant 0 : index
    %2 = vector.load %arg1[%c0_3, %c0_4, %c0_5] : memref<1x4x256xf32, #tpu.memory_space<vmem>>, vector<1x4x256xf32>
    %3 = vector.shape_cast %2 : vector<1x4x256xf32> to vector<4x256xf32>
    %cst = arith.constant dense<0.000000e+00> : vector<4xf32>
    %4 = vector.multi_reduction <add>, %3, %cst [1] : vector<4x256xf32> to vector<4xf32>
    %5 = vector.shape_cast %4 : vector<4xf32> to vector<4x1xf32>
    %cst_6 = arith.constant 3.906250e-03 : f32
    %6 = vector.broadcast %cst_6 : f32 to vector<4x1xf32>
    %7 = arith.mulf %5, %6 : vector<4x1xf32>
    %cst_7 = arith.constant dense<0.000000e+00> : vector<2x1xf32>
    %8 = tpu.matmul %0, %7, %cst_7 {dimension_numbers = #tpu.dot_dimension_numbers<[1], [0], [0], [1], [0, 0, 1, 1], [], []>} : vector<2x4xf32>, vector<4x1xf32>, vector<2x1xf32> -> vector<2x1xf32>
    %cst_8 = arith.constant 0.000000e+00 : f32
    %9 = vector.broadcast %cst_8 : f32 to vector<2x1xf32>
    %10 = arith.maximumf %8, %9 : vector<2x1xf32>
    %cst_9 = arith.constant dense<0.000000e+00> : vector<4x1xf32>
    %11 = tpu.matmul %1, %10, %cst_9 {dimension_numbers = #tpu.dot_dimension_numbers<[1], [0], [0], [1], [0, 0, 1, 1], [], []>} : vector<4x2xf32>, vector<2x1xf32>, vector<4x1xf32> -> vector<4x1xf32>
    %cst_10 = arith.constant 0.000000e+00 : f32
    %12 = vector.broadcast %cst_10 : f32 to vector<4x1xf32>
    %13 = arith.subf %12, %11 : vector<4x1xf32>
    %14 = math.exp %13 : vector<4x1xf32>
    %cst_11 = arith.constant 1.000000e+00 : f32
    %15 = vector.broadcast %cst_11 : f32 to vector<4x1xf32>
    %16 = arith.addf %15, %14 : vector<4x1xf32>
    %cst_12 = arith.constant 1.000000e+00 : f32
    %17 = vector.broadcast %cst_12 : f32 to vector<4x1xf32>
    %18 = arith.divf %17, %16 : vector<4x1xf32>
    %19 = vector.broadcast %18 : vector<4x1xf32> to vector<4x256xf32>
    %20 = arith.mulf %3, %19 : vector<4x256xf32>
    %c0_13 = arith.constant 0 : index
    %c0_14 = arith.constant 0 : index
    %c0_15 = arith.constant 0 : index
    %21 = vector.load %arg4[%c0_13, %c0_14, %c0_15] : memref<1x4x256xf32, #tpu.memory_space<vmem>>, vector<1x4x256xf32>
    %22 = vector.shape_cast %21 : vector<1x4x256xf32> to vector<4x256xf32>
    %23 = vector.shape_cast %20 : vector<4x256xf32> to vector<1x4x256xf32>
    tpu.vector_store %arg4[%c0_13, %c0_14, %c0_15], %23 {strides = array<i32>} : memref<1x4x256xf32, #tpu.memory_space<vmem>>, vector<1x4x256xf32>,
    return
  }
  func.func @transform_0(%arg0: i32) -> (i32, i32, i32) {
    %c0_i32 = arith.constant 0 : i32
    %c0_i32_0 = arith.constant 0 : i32
    %c0_i32_1 = arith.constant 0 : i32
    return %arg0, %c0_i32, %c0_i32_0 : i32, i32, i32
  }
  func.func @transform_1(%arg0: i32) -> (i32, i32) {
    %c0_i32 = arith.constant 0 : i32
    %c0_i32_0 = arith.constant 0 : i32
    %c0_i32_1 = arith.constant 0 : i32
    return %c0_i32, %c0_i32_0 : i32, i32
  }
  func.func @transform_2(%arg0: i32) -> (i32, i32) {
    %c0_i32 = arith.constant 0 : i32
    %c0_i32_0 = arith.constant 0 : i32
    %c0_i32_1 = arith.constant 0 : i32
    return %c0_i32, %c0_i32_0 : i32, i32
  }
  func.func @transform_3(%arg0: i32) -> (i32, i32, i32) {
    %c0_i32 = arith.constant 0 : i32
    %c0_i32_0 = arith.constant 0 : i32
    %c0_i32_1 = arith.constant 0 : i32
    return %arg0, %c0_i32, %c0_i32_0 : i32, i32, i32
  }
}

</mosaic_0001>

<llo_original>
// kernel: tpu_custom_call.1
$region0: #{tpu_custom_call.1}
  #allocation0 [shape = 'u32[]', space=smem, size = 0x4, offset = 0x4, fixed_abs, tag = 'smem constant byte address 0x4 - core index']
  #allocation1 [shape = 'u32[144,128]{1,0:T(1,128)}', space=vmem, size = 0x12000, scoped, tag = 'internal scratch']
  %s0 = inlined_call_operand.hbm [shape: f32[2,4,256], index: 0, kind: input, shape index: {}]
  %s1 = inlined_call_operand.vmem [shape: f32[2,4], index: 1, kind: input, shape index: {}]
  %s2 = inlined_call_operand.vmem [shape: f32[4,2], index: 2, kind: input, shape index: {}]
  %s3 = inlined_call_operand.hbm [shape: f32[2,4,256], index: 3, kind: output, shape index: {}]
  %s4 = sld [smem:[#allocation0]]
  $region49: #{tpu_custom_call.1} parent=0
    _
  %s6 = ssub.s32 1, %s4
  %s7 = scalar_select 0, %s6, %s4
  $region1: #{tpu_custom_call.1} parent=0
    #allocation2 [shape = 'u8[8192]{0}', space=vmem, size = 0x2000, scoped, tag = 'input window, operand 0']
    #allocation3 [shape = 's32[2]{0}', space=sflag, size = 0x8, scoped, tag = 'scoped memory for tpu_custom_call.1']
    #allocation4 [shape = 's32[2]{0}', space=sflag, size = 0x8, scoped, tag = 'scoped memory for tpu_custom_call.1']
    #allocation5 [shape = 'u8[8192]{0}', space=vmem, size = 0x2000, scoped, tag = 'output window, operand 0']
    %8 = vsyncpa [#allocation3], 0
    %s9 = scalar_lea.sflag [#allocation3], 1
    %10 = vsyncpa %s9, 0
    %11 = vsyncpa [#allocation4], 0
    %s12 = scalar_lea.sflag [#allocation4], 1
    %13 = vsyncpa %s12, 0
    loop: start=0, step=1, limit=4
    $region2: #{tpu_custom_call.1} parent=1 // loop_pre_header
      _
    $region3: #{tpu_custom_call.1} parent=1 // loop_header
      %s15 = sphi 0, %s19
      %p16 = scmp.ge.s32.totalorder %s15, 4
      %s25 = sphi 0, %s27
      %s28 = sphi 0, %s25
      %s29 = sphi 0, %s28
      %s45 = sphi 0, %s29
      %s49 = sphi 0, %s49
      %s51 = sphi 0, %s49
      %s52 = sphi 0, %s51
      %s66 = sphi 0, %s52
      %s70 = sphi 0, %s70
      %s72 = sphi 0, %s70
      %s73 = sphi 0, %s72
      %s87 = sphi 0, %s73
      %s93 = sphi 0, %s95
      %s96 = sphi 0, %s93
      %s97 = sphi 0, %s96
      %s113 = sphi 0, %s97
    $region4: #{tpu_custom_call.1} parent=1 // loop_header_branch
      %18 = sbr.rel (%p16) target = $region8
    $region5: #{tpu_custom_call.1} parent=1 // loop_body
      %s20 = ssub.s32 %s15, 1
      %s21 = ssub.s32 %s15, 2
      %s22 = sadd.s32 %s15, 1
      %s23 = ssub.s32 %s15, %s22
      %p24 = scmp.eq.s32.totalorder %s23, 0
      %s26 = sadd.s32 %s25, 1
      %s27 = scalar_select %p24, %s25, %s26
      %p30 = pneg %p24
      %p31 = scmp.eq.s32.totalorder %s15, 1
      %p32 = por %p30, %p31
      %p33 = scmp.ne.s32.totalorder %s25, %s28
      %p34 = scmp.eq.s32.totalorder %s15, 0
      %p35 = por %p33, %p34
      %p36 = scmp.ne.s32.totalorder %s25, %s28
      %p37 = scmp.eq.s32.totalorder %s20, 1
      %p38 = por %p36, %p37
      %p39 = scmp.ne.s32.totalorder %s28, %s29
      %p40 = scmp.eq.s32.totalorder %s20, 0
      %p41 = por %p39, %p40
      %p42 = scmp.ne.s32.totalorder %s28, %s29
      %p43 = scmp.eq.s32.totalorder %s21, 1
      %p44 = por %p42, %p43
      %p46 = scmp.ne.s32.totalorder %s29, %s45
      %p47 = scmp.eq.s32.totalorder %s21, 0
      %p48 = por %p46, %p47
      %s50 = sadd.s32 %s49, 1
      %p53 = scmp.eq.s32.totalorder %s15, 1
      %p54 = scmp.ne.s32.totalorder %s49, %s51
      %p55 = scmp.eq.s32.totalorder %s15, 0
      %p56 = por %p54, %p55
      %p57 = scmp.ne.s32.totalorder %s49, %s51
      %p58 = scmp.eq.s32.totalorder %s20, 1
      %p59 = por %p57, %p58
      %p60 = scmp.ne.s32.totalorder %s51, %s52
      %p61 = scmp.eq.s32.totalorder %s20, 0
      %p62 = por %p60, %p61
      %p63 = scmp.ne.s32.totalorder %s51, %s52
      %p64 = scmp.eq.s32.totalorder %s21, 1
      %p65 = por %p63, %p64
      %p67 = scmp.ne.s32.totalorder %s52, %s66
      %p68 = scmp.eq.s32.totalorder %s21, 0
      %p69 = por %p67, %p68
      %s71 = sadd.s32 %s70, 1
      %p74 = scmp.eq.s32.totalorder %s15, 1
      %p75 = scmp.ne.s32.totalorder %s70, %s72
      %p76 = scmp.eq.s32.totalorder %s15, 0
      %p77 = por %p75, %p76
      %p78 = scmp.ne.s32.totalorder %s70, %s72
      %p79 = scmp.eq.s32.totalorder %s20, 1
      %p80 = por %p78, %p79
      %p81 = scmp.ne.s32.totalorder %s72, %s73
      %p82 = scmp.eq.s32.totalorder %s20, 0
      %p83 = por %p81, %p82
      %p84 = scmp.ne.s32.totalorder %s72, %s73
      %p85 = scmp.eq.s32.totalorder %s21, 1
      %p86 = por %p84, %p85
      %p88 = scmp.ne.s32.totalorder %s73, %s87
      %p89 = scmp.eq.s32.totalorder %s21, 0
      %p90 = por %p88, %p89
      %s91 = ssub.s32 %s15, %s22
      %p92 = scmp.eq.s32.totalorder %s91, 0
      %s94 = sadd.s32 %s93, 1
      %s95 = scalar_select %p92, %s93, %s94
      %p98 = pneg %p92
      %p99 = scmp.eq.s32.totalorder %s15, 1
      %p100 = por %p98, %p99
      %p101 = scmp.ne.s32.totalorder %s93, %s96
      %p102 = scmp.eq.s32.totalorder %s15, 0
      %p103 = por %p101, %p102
      %p104 = scmp.ne.s32.totalorder %s93, %s96
      %p105 = scmp.eq.s32.totalorder %s20, 1
      %p106 = por %p104, %p105
      %p107 = scmp.ne.s32.totalorder %s96, %s97
      %p108 = scmp.eq.s32.totalorder %s20, 0
      %p109 = por %p107, %p108
      %p110 = scmp.ne.s32.totalorder %s96, %s97
      %p111 = scmp.eq.s32.totalorder %s21, 1
      %p112 = por %p110, %p111
      %p114 = scmp.ne.s32.totalorder %s97, %s113
      %p115 = scmp.eq.s32.totalorder %s21, 0
      %p116 = por %p114, %p115
      %p117 = scmp.le.s32.totalorder 1, %s15
      %p118 = scmp.lt.s32.totalorder %s15, 3
      %p119 = pnand %p117, %p118
      %p120 = pneg %p119
      // Predicated region
      $region9: #{tpu_custom_call.1} parent=5 // pred_check
        _
      $region10: #{tpu_custom_call.1} parent=5 // pred_check_branch
        %122 = sbr.rel (%p119) target = $region12
      $region11: #{tpu_custom_call.1} parent=5 // pred_region
        %s123 = ssub.s32 %s15, 1
        // Predicated region
        $region13: #{tpu_custom_call.1} parent=11 // pred_check
          %p124 = pneg %p62
        $region14: #{tpu_custom_call.1} parent=11 // pred_check_branch
          %126 = sbr.rel (%p124) target = $region16
        $region15: #{tpu_custom_call.1} parent=11 // pred_region
          _
        $region16: #{tpu_custom_call.1} parent=11 // pred_fallthru
          _
        // Predicated region
        $region17: #{tpu_custom_call.1} parent=11 // pred_check
          %p127 = pneg %p83
        $region18: #{tpu_custom_call.1} parent=11 // pred_check_branch
          %129 = sbr.rel (%p127) target = $region20
        $region19: #{tpu_custom_call.1} parent=11 // pred_region
          _
        $region20: #{tpu_custom_call.1} parent=11 // pred_fallthru
          _
      $region12: #{tpu_custom_call.1} parent=5 // pred_fallthru
        _
      %p130 = scmp.lt.s32.totalorder %s15, 2
      // Predicated region
      $region21: #{tpu_custom_call.1} parent=5 // pred_check
        %p131 = pneg %p130
      $region22: #{tpu_custom_call.1} parent=5 // pred_check_branch
        %133 = sbr.rel (%p131) target = $region24
      $region23: #{tpu_custom_call.1} parent=5 // pred_region
        // Predicated region
        $region25: #{tpu_custom_call.1} parent=23 // pred_check
          %p134 = pneg %p35
        $region26: #{tpu_custom_call.1} parent=23 // pred_check_branch
          %136 = sbr.rel (%p134) target = $region28
        $region27: #{tpu_custom_call.1} parent=23 // pred_region
          %s137 = sand.u32 %s25, 1
          %s138 = scalar_lea.sflag [#allocation3], %s137
          %s139 = sand.u32 %s25, 1
          %s140 = smul.addr %s139, 8
          %s141 = scalar_lea.vmem [#allocation2], %s140
          %s143 = ssub.s32 128, 128
          %144 = vsyncadd %s138, %s143
          %s145 = smul.addr %s15, 2
          %s146 = smul.addr %s145, 64
          %s147 = scalar_lea.hbm %s0, %s146
          %s149 = sshll.u32 %s141, 4
          %s150 = int_to_ptr.vmem [resolvable:$true] %s149
          %152 = dma.hbm_to_vmem [thread:$0]  %s147, 128, %s150, %s138
        $region28: #{tpu_custom_call.1} parent=23 // pred_fallthru
          _
      $region24: #{tpu_custom_call.1} parent=5 // pred_fallthru
        _
      %p153 = scmp.le.s32.totalorder 1, %s15
      %p154 = scmp.lt.s32.totalorder %s15, 3
      %p155 = pnand %p153, %p154
      %p156 = pneg %p155
      // Predicated region
      $region29: #{tpu_custom_call.1} parent=5 // pred_check
        _
      $region30: #{tpu_custom_call.1} parent=5 // pred_check_branch
        %158 = sbr.rel (%p155) target = $region32
      $region31: #{tpu_custom_call.1} parent=5 // pred_region
        %s159 = ssub.s32 %s15, 1
        %s160 = sand.u32 %s28, 1
        %s161 = scalar_lea.sflag [#allocation3], %s160
        %s162 = sand.u32 %s28, 1
        %s163 = smul.addr %s162, 8
        %s164 = scalar_lea.vmem [#allocation2], %s163
        // Predicated region
        $region33: #{tpu_custom_call.1} parent=31 // pred_check
          %p165 = pneg %p41
        $region34: #{tpu_custom_call.1} parent=31 // pred_check_branch
          %167 = sbr.rel (%p165) target = $region36
        $region35: #{tpu_custom_call.1} parent=31 // pred_region
          %168 = dma.done %s161, 128
        $region36: #{tpu_custom_call.1} parent=31 // pred_fallthru
          _
        %s169 = sand.u32 %s28, 1
        %s170 = scalar_lea.sflag [#allocation3], %s169
        %s171 = sand.u32 %s28, 1
        %s172 = smul.addr %s171, 8
        %s173 = scalar_lea.vmem [#allocation2], %s172
        %p174 = pneg %p41
        %p175 = pneg %p38
        %p176 = pneg %p62
        %p177 = pneg %p59
        %p178 = pneg %p83
        %p179 = pneg %p80
        %p180 = pneg %p109
        %p181 = pneg %p106
        %s182 = sand.u32 %s96, 1
        %s183 = scalar_lea.sflag [#allocation4], %s182
        %s184 = sand.u32 %s96, 1
        %s185 = smul.addr %s184, 8
        %s186 = scalar_lea.vmem [#allocation5], %s185
        %v187 = vld [vmem:[%s1] sm:$0x3]
        %v188 = vld [vmem:[%s2] sm:$0xf]
        %v189 = vld [vmem:[%s164] sm:$0xff]
        %v191 = vcombine.high %v189, %v189
        %vm193 = vcmask 1043456
        %v194 = vsel %vm193, %v189, 0.0
        %v195 = vsel %vm193, %v191, 0.0
        %v196 = vadd.f32 %v194, %v195
        %197 = vadd.xlane.f32.xlu0 %v196
        %v198 = vpop.xlane.xlu0 %197
        %v199 = vmul.f32 %v198, 0.00390625
        %vm200 = vcmask 31744
        %v202 = vsel %vm200, %v187, 0
        %v205 = vsel %vm193, %v199, 0
        %207 = vmatprep.subr.mxu0 0.0
        %208 = vmatpush1.msra.mxu0 0.0
        %209 = vmatprep.subr.mxu0 0.0
        %210 = vmatpush1.msra.mxu0 0.0
        %211 = vmatprep.subr.mxu0 0.0
        %212 = vmatpush1.msra.mxu0 0.0
        %213 = vmatprep.subr.mxu0 0.0
        %214 = vmatpush1.msra.mxu0 0.0
        %215 = vmatprep.subr.mxu0 0.0
        %216 = vmatpush1.msra.mxu0 0.0
        %217 = vmatprep.subr.mxu0 0.0
        %218 = vmatpush1.msra.mxu0 0.0
        %219 = vmatprep.subr.mxu0 0.0
        %220 = vmatpush1.msra.mxu0 0.0
        %221 = vmatprep.subr.mxu0 0.0
        %222 = vmatpush1.msra.mxu0 0.0
        %223 = vmatprep.subr.mxu0 0.0
        %224 = vmatpush1.msra.mxu0 0.0
        %225 = vmatprep.subr.mxu0 0.0
        %226 = vmatpush1.msra.mxu0 0.0
        %227 = vmatprep.subr.mxu0 0.0
        %228 = vmatpush1.msra.mxu0 0.0
        %229 = vmatprep.subr.mxu0 0.0
        %230 = vmatpush1.msra.mxu0 0.0
        %231 = vmatprep.subr.mxu0 0.0
        %232 = vmatpush1.msra.mxu0 0.0
        %233 = vmatprep.subr.mxu0 0.0
        %234 = vmatpush1.msra.mxu0 0.0
        %235 = vmatprep.subr.mxu0 0.0
        %236 = vmatpush1.msra.mxu0 0.0
        %237 = vmatprep.subr.mxu0 0.0
        %238 = vmatpush1.msra.mxu0 %v205
        %239 = vmatprep.subr.mxu0 0.0
        %240 = vmatpush2.msra.mxu0 0.0
        %241 = vmatprep.subr.mxu0 0.0
        %242 = vmatpush2.msra.mxu0 0.0
        %243 = vmatprep.subr.mxu0 0.0
        %244 = vmatpush2.msra.mxu0 0.0
        %245 = vmatprep.subr.mxu0 0.0
        %246 = vmatpush2.msra.mxu0 0.0
        %247 = vmatprep.subr.mxu0 0.0
        %248 = vmatpush2.msra.mxu0 0.0
        %249 = vmatprep.subr.mxu0 0.0
        %250 = vmatpush2.msra.mxu0 0.0
        %251 = vmatprep.subr.mxu0 0.0
        %252 = vmatpush2.msra.mxu0 0.0
        %253 = vmatprep.subr.mxu0 0.0
        %254 = vmatpush2.msra.mxu0 0.0
        %255 = vmatprep.subr.mxu0 0.0
        %256 = vmatpush2.msra.mxu0 0.0
        %257 = vmatprep.subr.mxu0 0.0
        %258 = vmatpush2.msra.mxu0 0.0
        %259 = vmatprep.subr.mxu0 0.0
        %260 = vmatpush2.msra.mxu0 0.0
        %261 = vmatprep.subr.mxu0 0.0
        %262 = vmatpush2.msra.mxu0 0.0
        %263 = vmatprep.subr.mxu0 0.0
        %264 = vmatpush2.msra.mxu0 0.0
        %265 = vmatprep.subr.mxu0 0.0
        %266 = vmatpush2.msra.mxu0 0.0
        %267 = vmatprep.subr.mxu0 0.0
        %268 = vmatpush2.msra.mxu0 0.0
        %269 = vmatprep.subr.mxu0 0.0
        %270 = vmatpush2.msra.mxu0 0.0
        %271 = vmatprep.mubr.f32.mxu0 0.0
        %272 = vmatmul.mubr.f32.gmra.mxu0 %v202
        %v273 = vpop.f32.mrf.mxu0
        %v274 = vadd.f32 0.0, %v273
        %v275 = vpop.f32.mrf.mxu0
        %276 = vdwg.mxu0
        %v277 = vmax.f32 %v274, 0.0
        %vm278 = vcmask 15360
        %v280 = vsel %vm278, %v188, 0
        %vm282 = vcmask 1041408
        %v284 = vsel %vm282, %v277, 0
        %286 = vmatprep.subr.mxu0 0.0
        %287 = vmatpush1.msra.mxu0 0.0
        %288 = vmatprep.subr.mxu0 0.0
        %289 = vmatpush1.msra.mxu0 0.0
        %290 = vmatprep.subr.mxu0 0.0
        %291 = vmatpush1.msra.mxu0 0.0
        %292 = vmatprep.subr.mxu0 0.0
        %293 = vmatpush1.msra.mxu0 0.0
        %294 = vmatprep.subr.mxu0 0.0
        %295 = vmatpush1.msra.mxu0 0.0
        %296 = vmatprep.subr.mxu0 0.0
        %297 = vmatpush1.msra.mxu0 0.0
        %298 = vmatprep.subr.mxu0 0.0
        %299 = vmatpush1.msra.mxu0 0.0
        %300 = vmatprep.subr.mxu0 0.0
        %301 = vmatpush1.msra.mxu0 0.0
        %302 = vmatprep.subr.mxu0 0.0
        %303 = vmatpush1.msra.mxu0 0.0
        %304 = vmatprep.subr.mxu0 0.0
        %305 = vmatpush1.msra.mxu0 0.0
        %306 = vmatprep.subr.mxu0 0.0
        %307 = vmatpush1.msra.mxu0 0.0
        %308 = vmatprep.subr.mxu0 0.0
        %309 = vmatpush1.msra.mxu0 0.0
        %310 = vmatprep.subr.mxu0 0.0
        %311 = vmatpush1.msra.mxu0 0.0
        %312 = vmatprep.subr.mxu0 0.0
        %313 = vmatpush1.msra.mxu0 0.0
        %314 = vmatprep.subr.mxu0 0.0
        %315 = vmatpush1.msra.mxu0 0.0
        %316 = vmatprep.subr.mxu0 0.0
        %317 = vmatpush1.msra.mxu0 %v284
        %318 = vmatprep.subr.mxu0 0.0
        %319 = vmatpush2.msra.mxu0 0.0
        %320 = vmatprep.subr.mxu0 0.0
        %321 = vmatpush2.msra.mxu0 0.0
        %322 = vmatprep.subr.mxu0 0.0
        %323 = vmatpush2.msra.mxu0 0.0
        %324 = vmatprep.subr.mxu0 0.0
        %325 = vmatpush2.msra.mxu0 0.0
        %326 = vmatprep.subr.mxu0 0.0
        %327 = vmatpush2.msra.mxu0 0.0
        %328 = vmatprep.subr.mxu0 0.0
        %329 = vmatpush2.msra.mxu0 0.0
        %330 = vmatprep.subr.mxu0 0.0
        %331 = vmatpush2.msra.mxu0 0.0
        %332 = vmatprep.subr.mxu0 0.0
        %333 = vmatpush2.msra.mxu0 0.0
        %334 = vmatprep.subr.mxu0 0.0
        %335 = vmatpush2.msra.mxu0 0.0
        %336 = vmatprep.subr.mxu0 0.0
        %337 = vmatpush2.msra.mxu0 0.0
        %338 = vmatprep.subr.mxu0 0.0
        %339 = vmatpush2.msra.mxu0 0.0
        %340 = vmatprep.subr.mxu0 0.0
        %341 = vmatpush2.msra.mxu0 0.0
        %342 = vmatprep.subr.mxu0 0.0
        %343 = vmatpush2.msra.mxu0 0.0
        %344 = vmatprep.subr.mxu0 0.0
        %345 = vmatpush2.msra.mxu0 0.0
        %346 = vmatprep.subr.mxu0 0.0
        %347 = vmatpush2.msra.mxu0 0.0
        %348 = vmatprep.subr.mxu0 0.0
        %349 = vmatpush2.msra.mxu0 0.0
        %350 = vmatprep.mubr.f32.mxu0 0.0
        %351 = vmatmul.mubr.f32.gmra.mxu0 %v280
        %v352 = vpop.f32.mrf.mxu0
        %v353 = vadd.f32 0.0, %v352
        %v354 = vpop.f32.mrf.mxu0
        %355 = vdwg.mxu0
        %v356 = vsub.f32 0.0, %v353
        %v357 = vmul.f32 %v356, 1.442695
        %v358 = vpow.pop %v357
        %v359 = vadd.f32 %v358, 1.0
        %v360 = vrcp.pop %v359
        %v361 = vmul.f32 1.0, %v360
        %363 = vset.pattern.permute.xlu0 0
        %364 = vperm.xlu0 %363, %v361
        %v365 = vpop.permute.xlu0 %364
        %v367 = vunpack.c.l.s4 839922192
        %v368 = vunpack.c.0.s8 %v367
        %v369 = vlaneseq
        %v370 = vshrl.u32 %v369, 7
        %v371 = vsub.s32 %v368, %v370
        %v372 = vrot.slane %v365, %v371
        %v374 = vmul.f32 %v189, %v372
        %375 = vst [vmem:[%s186] sm:$0xff] %v374
        %s376 = sand.u32 %s96, 1
        %s377 = scalar_lea.sflag [#allocation4], %s376
        %s378 = sand.u32 %s96, 1
        %s379 = smul.addr %s378, 8
        %s380 = scalar_lea.vmem [#allocation5], %s379
        // Predicated region
        $region37: #{tpu_custom_call.1} parent=31 // pred_check
          %p381 = pneg %p106
        $region38: #{tpu_custom_call.1} parent=31 // pred_check_branch
          %383 = sbr.rel (%p381) target = $region40
        $region39: #{tpu_custom_call.1} parent=31 // pred_region
          %s385 = ssub.s32 128, 128
          %386 = vsyncadd %s377, %s385
          %s387 = smul.addr %s20, 2
          %s388 = smul.addr %s387, 64
          %s389 = scalar_lea.hbm %s3, %s388
          %s391 = sshll.u32 %s380, 4
          %s392 = int_to_ptr.vmem [resolvable:$true] %s391
          %394 = dma.vmem_to_hbm [thread:$0]  %s392, 128, %s389, %s377
        $region40: #{tpu_custom_call.1} parent=31 // pred_fallthru
          _
      $region32: #{tpu_custom_call.1} parent=5 // pred_fallthru
        _
      %p395 = scmp.le.s32.totalorder 2, %s15
      // Predicated region
      $region41: #{tpu_custom_call.1} parent=5 // pred_check
        %p396 = pneg %p395
      $region42: #{tpu_custom_call.1} parent=5 // pred_check_branch
        %398 = sbr.rel (%p396) target = $region44
      $region43: #{tpu_custom_call.1} parent=5 // pred_region
        %s399 = ssub.s32 %s15, 2
        // Predicated region
        $region45: #{tpu_custom_call.1} parent=43 // pred_check
          %p400 = pneg %p112
        $region46: #{tpu_custom_call.1} parent=43 // pred_check_branch
          %402 = sbr.rel (%p400) target = $region48
        $region47: #{tpu_custom_call.1} parent=43 // pred_region
          %s403 = sand.u32 %s97, 1
          %s404 = scalar_lea.sflag [#allocation4], %s403
          %s405 = sand.u32 %s97, 1
          %s406 = smul.addr %s405, 8
          %s407 = scalar_lea.vmem [#allocation5], %s406
          %408 = dma.done %s404, 128
        $region48: #{tpu_custom_call.1} parent=43 // pred_fallthru
          _
      $region44: #{tpu_custom_call.1} parent=5 // pred_fallthru
        _
    $region6: #{tpu_custom_call.1} parent=1 // loop_footer
      %s19 = sadd.s32 1, %s15
    $region7: #{tpu_custom_call.1} parent=1 // loop_footer_branch
      %14 = sbr.rel target = $region3
    $region8: #{tpu_custom_call.1} parent=1 // loop_exit
      _
    %409 = vsyncpa [#allocation3], 1
    %s410 = scalar_lea.sflag [#allocation3], 1
    %411 = vsyncpa %s410, 1
    %412 = vsyncpa [#allocation4], 1
    %s413 = scalar_lea.sflag [#allocation4], 1
    %414 = vsyncpa %s413, 1

</llo_original>
